<compile_context>
chip_gen: v7x
topology: tpu7x:2x2x1
jax: 0.10.0
libtpu: 0.0.40
codegen_flags: <defaults>
</compile_context>

<pallas_src>
import numpy as np
import jax
import jax.numpy as jnp
from jax import lax
from jax.experimental import pallas as pl
from jax.experimental.pallas import tpu as pltpu


def make_mha_kernel(emb_size, num_heads, seq_len, batch_per_step):
    """Kernel processing `batch_per_step` batch elements per grid step."""
    E, H, N, BB = emb_size, num_heads, seq_len, batch_per_step
    D = E // H

    def kernel(x_ref, wqkv_ref, bqkv_ref, wp_ref, bp_ref, o_ref):
        # Fused Q|K|V projection over all BB*N rows: one wide bf16 MXU matmul
        # with f32 accumulation + one bias add.  1/sqrt(emb_size) is pre-folded
        # into the Q columns of wqkv/bqkv by the wrapper, so no scaling here.
        qkv = (jnp.dot(x_ref[...], wqkv_ref[...],
                       preferred_element_type=jnp.float32)
               + bqkv_ref[...])                                     # (BB*N, 3E) f32
        # qkv is only ever consumed as an MXU operand -> keep it bf16 resident.
        qkv = qkv.astype(jnp.bfloat16)
        wp = wp_ref[...]                                            # (E, E) bf16

        for b in range(BB):                                         # static, BB in {1, B}
            qkv_b = qkv[b * N:(b + 1) * N, :]                       # (N, 3E) bf16
            # Accumulate the output projection per head directly into an (N, E)
            # f32 accumulator seeded with the projection bias — no head concat,
            # no separate (N,E)@(E,E) epilogue matmul.
            acc = jnp.broadcast_to(bp_ref[...], (N, E))             # (N, E) f32

            for h in range(H):                                      # static unroll, H small
                lo = h * D
                q = qkv_b[:, lo:lo + D]                             # (N, D) bf16 (pre-scaled)
                k = qkv_b[:, E + lo:E + lo + D]                     # (N, D) bf16
                v = qkv_b[:, 2 * E + lo:2 * E + lo + D]             # (N, D) bf16

                # energy = q @ k^T, contracting last dims (no k.T materialization)
                energy = lax.dot_general(q, k, (((1,), (1,)), ((), ())),
                                         preferred_element_type=jnp.float32)  # (N,N) f32

                # Numerically-stable softmax, normalization deferred past the PV
                # matmul (N*D instead of N*N multiplies by the reciprocal).
                m = jnp.max(energy, axis=-1, keepdims=True)
                p = jnp.exp(energy - m)                             # (N, N) f32, unnormalized
                denom = jnp.sum(p, axis=-1, keepdims=True)          # (N, 1) f32

                o_h = jnp.dot(p.astype(jnp.bfloat16), v,
                              preferred_element_type=jnp.float32)   # (N, D) f32
                o_h = o_h * pl.reciprocal(denom, approx=True)       # EUP, deferred norm

                # Per-head slab of the output projection:
                #   sum_h (N,D)@(D,E) == (N,E)@(E,E), but with no head reassembly.
                acc = acc + jnp.dot(o_h.astype(jnp.bfloat16), wp[lo:lo + D, :],
                                    preferred_element_type=jnp.float32)

            o_ref[b * N:(b + 1) * N, :] = acc.astype(o_ref.dtype)

    return kernel


def fuse_mha_params(wq, bq, wk, bk, wv, bv, wp, bp):
    """Precompute fused kernel parameters ONCE (hoisted off the per-call path).

    * Wq|Wk|Wv fused into one (E, 3E) weight, the three biases into one (1, 3E).
    * 1/sqrt(emb_size) folded into the Q columns (weight AND bias).
    * MXU operands stored as bf16; biases stay f32 (added to f32 accumulators).
    """
    E = wq.shape[0]
    inv_scale = 1.0 / (float(E) ** 0.5)
    wqkv = jnp.concatenate([wq * inv_scale, wk, wv], axis=1).astype(jnp.bfloat16)
    bqkv = jnp.concatenate([bq * inv_scale, bk, bv]).reshape(1, 3 * E).astype(jnp.float32)
    return wqkv, bqkv, wp.astype(jnp.bfloat16), bp.reshape(1, E).astype(jnp.float32)


def _single_tensorcore_chip():
    """True on chips with one TensorCore (v5e/v6e): a parallel batch grid buys
    nothing there, so collapse to a single grid step.  v7x (2 TCs/chip) and any
    unrecognized chip keep the parallel batch axis (correct everywhere)."""
    try:
        kind = jax.devices()[0].device_kind.lower()
    except Exception:
        return False
    return any(t in kind for t in ("v5 lite", "v5e", "v5litepod",
                                   "v6 lite", "v6e", "v6litepod"))


def multi_head_attention_pallas(x, fused_params, num_heads, *, single_step=None):
    """x: (B, N, E) f32; fused_params from fuse_mha_params()."""
    B, N, E = x.shape
    assert E % num_heads == 0
    wqkv, bqkv, wp, bp = fused_params

    if single_step is None:
        # Generation-aware grid: one step on 1-TC chips (when trivially VMEM-resident),
        # otherwise a B-way "parallel" batch axis (uses both v7x TensorCores).
        single_step = _single_tensorcore_chip() and (B * N * (5 * E) * 4 < (2 << 20))
    if single_step or B == 1:
        batch_per_step, steps = B, 1
    else:
        batch_per_step, steps = 1, B

    rows = batch_per_step * N
    kernel = make_mha_kernel(E, num_heads, N, batch_per_step)

    out = pl.pallas_call(
        kernel,
        out_shape=jax.ShapeDtypeStruct((B * N, E), jnp.float32),
        grid_spec=pltpu.PrefetchScalarGridSpec(
            num_scalar_prefetch=0,
            grid=(steps,),
            in_specs=[
                pl.BlockSpec((rows, E), lambda b: (b, 0)),      # x rows (bf16)
                # Grid-invariant parameter blocks (constant index -> no re-DMA).
                pl.BlockSpec((E, 3 * E), lambda b: (0, 0)),     # wqkv (bf16)
                pl.BlockSpec((1, 3 * E), lambda b: (0, 0)),     # bqkv (f32)
                pl.BlockSpec((E, E), lambda b: (0, 0)),         # wp (bf16)
                pl.BlockSpec((1, E), lambda b: (0, 0)),         # bp (f32)
            ],
            out_specs=pl.BlockSpec((rows, E), lambda b: (b, 0)),
        ),
        compiler_params=pltpu.CompilerParams(
            dimension_semantics=("parallel",)),
    )(x.reshape(B * N, E).astype(jnp.bfloat16), wqkv, bqkv, wp, bp)

    return out.reshape(B, N, E)


def multi_head_attention_ref(x, wq, bq, wk, bk, wv, bv, wp, bp, num_heads):
    """Pure-JAX f32 reference mirroring the PyTorch forward (eval mode, mask=None)."""
    B, N, E = x.shape
    D = E // num_heads

    def heads(t):  # 'b n (h d) -> b h n d'
        return t.reshape(B, N, num_heads, D).transpose(0, 2, 1, 3)

    q = heads(x @ wq + bq)
    k = heads(x @ wk + bk)
    v = heads(x @ wv + bv)
    energy = jnp.einsum('bhqd,bhkd->bhqk', q, k)
    att = jax.nn.softmax(energy / (E ** 0.5), axis=-1)
    out = jnp.einsum('bhal,bhlv->bhav', att, v)
    out = out.transpose(0, 2, 1, 3).reshape(B, N, E)
    return out @ wp + bp


if __name__ == "__main__":
    B, N, E, H = 2, 8, 32, 4  # batch, seq, emb_size, num_heads

    key = jax.random.PRNGKey(0)
    ks = jax.random.split(key, 9)
    x = jax.random.normal(ks[0], (B, N, E), dtype=jnp.float32)

    # Deterministic parameter init (Linear weights stored as (in, out)).
    s = 1.0 / np.sqrt(E)
    wq = jax.random.uniform(ks[1], (E, E), jnp.float32, -s, s)
    wk = jax.random.uniform(ks[2], (E, E), jnp.float32, -s, s)
    wv = jax.random.uniform(ks[3], (E, E), jnp.float32, -s, s)
    wp = jax.random.uniform(ks[4], (E, E), jnp.float32, -s, s)
    bq = jax.random.uniform(ks[5], (E,), jnp.float32, -s, s)
    bk = jax.random.uniform(ks[6], (E,), jnp.float32, -s, s)
    bv = jax.random.uniform(ks[7], (E,), jnp.float32, -s, s)
    bp = jax.random.uniform(ks[8], (E,), jnp.float32, -s, s)

    # Fused parameters computed once, off the per-call path.
    fused = fuse_mha_params(wq, bq, wk, bk, wv, bv, wp, bp)
    fused = jax.tree_util.tree_map(jax.block_until_ready, fused)

    out = multi_head_attention_pallas(x, fused, H)
    out = jax.block_until_ready(out)

    ref = multi_head_attention_ref(x, wq, bq, wk, bk, wv, bv, wp, bp, H)
    # Tolerance accounts for bf16 MXU operands (f32 accumulation) and the EUP
    # approximate-reciprocal softmax normalization.
    np.testing.assert_allclose(np.asarray(out), np.asarray(ref),
                               rtol=2e-2, atol=2e-2)
    print("KERNEL_OK")
</pallas_src>

<mosaic_0001>
module attributes {stable_mosaic.version = 11 : i64} {
  func.func @kernel(%arg0: i32, %arg1: memref<8x32xbf16, #tpu.memory_space<vmem>>, %arg2: memref<32x96xbf16, #tpu.memory_space<vmem>>, %arg3: memref<1x96xf32, #tpu.memory_space<vmem>>, %arg4: memref<32x32xbf16, #tpu.memory_space<vmem>>, %arg5: memref<1x32xf32, #tpu.memory_space<vmem>>, %arg6: memref<8x32xf32, #tpu.memory_space<vmem>>) attributes {dimension_semantics = [#tpu.dimension_semantics<parallel>], iteration_bounds = array<i64: 2>, scalar_prefetch = 0 : i64, scratch_operands = 0 : i64, tpu.core_type = #tpu.core_type<tc>, window_params = [{transform_indices = @transform_0, window_bounds = array<i64: 8, 32>}, {pipeline_mode = #tpu.pipeline_mode<synchronous>, transform_indices = @transform_1, window_bounds = array<i64: 32, 96>}, {pipeline_mode = #tpu.pipeline_mode<synchronous>, transform_indices = @transform_2, window_bounds = array<i64: 1, 96>}, {pipeline_mode = #tpu.pipeline_mode<synchronous>, transform_indices = @transform_3, window_bounds = array<i64: 32, 32>}, {pipeline_mode = #tpu.pipeline_mode<synchronous>, transform_indices = @transform_4, window_bounds = array<i64: 1, 32>}, {transform_indices = @transform_5, window_bounds = array<i64: 8, 32>}]} {
    %c0 = arith.constant 0 : index
    %c0_0 = arith.constant 0 : index
    %0 = vector.load %arg1[%c0, %c0_0] : memref<8x32xbf16, #tpu.memory_space<vmem>>, vector<8x32xbf16>
    %c0_1 = arith.constant 0 : index
    %c0_2 = arith.constant 0 : index
    %1 = vector.load %arg2[%c0_1, %c0_2] : memref<32x96xbf16, #tpu.memory_space<vmem>>, vector<32x96xbf16>
    %cst = arith.constant dense<0.000000e+00> : vector<8x96xf32>
    %2 = tpu.matmul %0, %1, %cst {dimension_numbers = #tpu.dot_dimension_numbers<[1], [0], [0], [1], [0, 0, 1, 1], [], []>} : vector<8x32xbf16>, vector<32x96xbf16>, vector<8x96xf32> -> vector<8x96xf32>
    %c0_3 = arith.constant 0 : index
    %c0_4 = arith.constant 0 : index
    %3 = vector.load %arg3[%c0_3, %c0_4] : memref<1x96xf32, #tpu.memory_space<vmem>>, vector<1x96xf32>
    %4 = vector.broadcast %3 : vector<1x96xf32> to vector<8x96xf32>
    %5 = arith.addf %2, %4 : vector<8x96xf32>
    %6 = arith.truncf %5 : vector<8x96xf32> to vector<8x96xbf16>
    %c0_5 = arith.constant 0 : index
    %c0_6 = arith.constant 0 : index
    %7 = vector.load %arg4[%c0_5, %c0_6] : memref<32x32xbf16, #tpu.memory_space<vmem>>, vector<32x32xbf16>
    %c0_7 = arith.constant 0 : index
    %c0_8 = arith.constant 0 : index
    %8 = vector.load %arg5[%c0_7, %c0_8] : memref<1x32xf32, #tpu.memory_space<vmem>>, vector<1x32xf32>
    %9 = vector.shape_cast %8 : vector<1x32xf32> to vector<1x32xf32>
    %10 = vector.broadcast %9 : vector<1x32xf32> to vector<8x32xf32>
    %11 = vector.extract_strided_slice %6 {offsets = [0, 0], sizes = [8, 8], strides = [1, 1]} : vector<8x96xbf16> to vector<8x8xbf16>
    %12 = vector.extract_strided_slice %6 {offsets = [0, 32], sizes = [8, 8], strides = [1, 1]} : vector<8x96xbf16> to vector<8x8xbf16>
    %13 = vector.extract_strided_slice %6 {offsets = [0, 64], sizes = [8, 8], strides = [1, 1]} : vector<8x96xbf16> to vector<8x8xbf16>
    %cst_9 = arith.constant dense<0.000000e+00> : vector<8x8xf32>
    %14 = tpu.matmul %11, %12, %cst_9 {dimension_numbers = #tpu.dot_dimension_numbers<[1], [1], [0], [0], [0, 0, 1, 0], [], []>} : vector<8x8xbf16>, vector<8x8xbf16>, vector<8x8xf32> -> vector<8x8xf32>
    %cst_10 = arith.constant dense<0xFF800000> : vector<8xf32>
    %15 = vector.multi_reduction <maximumf>, %14, %cst_10 [1] : vector<8x8xf32> to vector<8xf32>
    %16 = vector.shape_cast %15 : vector<8xf32> to vector<8x1xf32>
    %17 = vector.broadcast %16 : vector<8x1xf32> to vector<8x8xf32>
    %18 = arith.subf %14, %17 : vector<8x8xf32>
    %19 = math.exp %18 : vector<8x8xf32>
    %cst_11 = arith.constant dense<0.000000e+00> : vector<8xf32>
    %20 = vector.multi_reduction <add>, %19, %cst_11 [1] : vector<8x8xf32> to vector<8xf32>
    %21 = vector.shape_cast %20 : vector<8xf32> to vector<8x1xf32>
    %22 = arith.truncf %19 : vector<8x8xf32> to vector<8x8xbf16>
    %cst_12 = arith.constant dense<0.000000e+00> : vector<8x8xf32>
    %23 = tpu.matmul %22, %13, %cst_12 {dimension_numbers = #tpu.dot_dimension_numbers<[1], [0], [0], [1], [0, 0, 1, 1], [], []>} : vector<8x8xbf16>, vector<8x8xbf16>, vector<8x8xf32> -> vector<8x8xf32>
    %24 = tpu.reciprocal %21 {approx = true} : vector<8x1xf32> -> vector<8x1xf32>
    %25 = vector.broadcast %24 : vector<8x1xf32> to vector<8x8xf32>
    %26 = arith.mulf %23, %25 : vector<8x8xf32>
    %27 = arith.truncf %26 : vector<8x8xf32> to vector<8x8xbf16>
    %28 = vector.extract_strided_slice %7 {offsets = [0, 0], sizes = [8, 32], strides = [1, 1]} : vector<32x32xbf16> to vector<8x32xbf16>
    %cst_13 = arith.constant dense<0.000000e+00> : vector<8x32xf32>
    %29 = tpu.matmul %27, %28, %cst_13 {dimension_numbers = #tpu.dot_dimension_numbers<[1], [0], [0], [1], [0, 0, 1, 1], [], []>} : vector<8x8xbf16>, vector<8x32xbf16>, vector<8x32xf32> -> vector<8x32xf32>
    %30 = arith.addf %10, %29 : vector<8x32xf32>
    %31 = vector.extract_strided_slice %6 {offsets = [0, 8], sizes = [8, 8], strides = [1, 1]} : vector<8x96xbf16> to vector<8x8xbf16>
    %32 = vector.extract_strided_slice %6 {offsets = [0, 40], sizes = [8, 8], strides = [1, 1]} : vector<8x96xbf16> to vector<8x8xbf16>
    %33 = vector.extract_strided_slice %6 {offsets = [0, 72], sizes = [8, 8], strides = [1, 1]} : vector<8x96xbf16> to vector<8x8xbf16>
    %cst_14 = arith.constant dense<0.000000e+00> : vector<8x8xf32>
    %34 = tpu.matmul %31, %32, %cst_14 {dimension_numbers = #tpu.dot_dimension_numbers<[1], [1], [0], [0], [0, 0, 1, 0], [], []>} : vector<8x8xbf16>, vector<8x8xbf16>, vector<8x8xf32> -> vector<8x8xf32>
    %cst_15 = arith.constant dense<0xFF800000> : vector<8xf32>
    %35 = vector.multi_reduction <maximumf>, %34, %cst_15 [1] : vector<8x8xf32> to vector<8xf32>
    %36 = vector.shape_cast %35 : vector<8xf32> to vector<8x1xf32>
    %37 = vector.broadcast %36 : vector<8x1xf32> to vector<8x8xf32>
    %38 = arith.subf %34, %37 : vector<8x8xf32>
    %39 = math.exp %38 : vector<8x8xf32>
    %cst_16 = arith.constant dense<0.000000e+00> : vector<8xf32>
    %40 = vector.multi_reduction <add>, %39, %cst_16 [1] : vector<8x8xf32> to vector<8xf32>
    %41 = vector.shape_cast %40 : vector<8xf32> to vector<8x1xf32>
    %42 = arith.truncf %39 : vector<8x8xf32> to vector<8x8xbf16>
    %cst_17 = arith.constant dense<0.000000e+00> : vector<8x8xf32>
    %43 = tpu.matmul %42, %33, %cst_17 {dimension_numbers = #tpu.dot_dimension_numbers<[1], [0], [0], [1], [0, 0, 1, 1], [], []>} : vector<8x8xbf16>, vector<8x8xbf16>, vector<8x8xf32> -> vector<8x8xf32>
    %44 = tpu.reciprocal %41 {approx = true} : vector<8x1xf32> -> vector<8x1xf32>
    %45 = vector.broadcast %44 : vector<8x1xf32> to vector<8x8xf32>
    %46 = arith.mulf %43, %45 : vector<8x8xf32>
    %47 = arith.truncf %46 : vector<8x8xf32> to vector<8x8xbf16>
    %48 = vector.extract_strided_slice %7 {offsets = [8, 0], sizes = [8, 32], strides = [1, 1]} : vector<32x32xbf16> to vector<8x32xbf16>
    %cst_18 = arith.constant dense<0.000000e+00> : vector<8x32xf32>
    %49 = tpu.matmul %47, %48, %cst_18 {dimension_numbers = #tpu.dot_dimension_numbers<[1], [0], [0], [1], [0, 0, 1, 1], [], []>} : vector<8x8xbf16>, vector<8x32xbf16>, vector<8x32xf32> -> vector<8x32xf32>
    %50 = arith.addf %30, %49 : vector<8x32xf32>
    %51 = vector.extract_strided_slice %6 {offsets = [0, 16], sizes = [8, 8], strides = [1, 1]} : vector<8x96xbf16> to vector<8x8xbf16>
    %52 = vector.extract_strided_slice %6 {offsets = [0, 48], sizes = [8, 8], strides = [1, 1]} : vector<8x96xbf16> to vector<8x8xbf16>
    %53 = vector.extract_strided_slice %6 {offsets = [0, 80], sizes = [8, 8], strides = [1, 1]} : vector<8x96xbf16> to vector<8x8xbf16>
    %cst_19 = arith.constant dense<0.000000e+00> : vector<8x8xf32>
    %54 = tpu.matmul %51, %52, %cst_19 {dimension_numbers = #tpu.dot_dimension_numbers<[1], [1], [0], [0], [0, 0, 1, 0], [], []>} : vector<8x8xbf16>, vector<8x8xbf16>, vector<8x8xf32> -> vector<8x8xf32>
    %cst_20 = arith.constant dense<0xFF800000> : vector<8xf32>
    %55 = vector.multi_reduction <maximumf>, %54, %cst_20 [1] : vector<8x8xf32> to vector<8xf32>
    %56 = vector.shape_cast %55 : vector<8xf32> to vector<8x1xf32>
    %57 = vector.broadcast %56 : vector<8x1xf32> to vector<8x8xf32>
    %58 = arith.subf %54, %57 : vector<8x8xf32>
    %59 = math.exp %58 : vector<8x8xf32>
    %cst_21 = arith.constant dense<0.000000e+00> : vector<8xf32>
    %60 = vector.multi_reduction <add>, %59, %cst_21 [1] : vector<8x8xf32> to vector<8xf32>
    %61 = vector.shape_cast %60 : vector<8xf32> to vector<8x1xf32>
    %62 = arith.truncf %59 : vector<8x8xf32> to vector<8x8xbf16>
    %cst_22 = arith.constant dense<0.000000e+00> : vector<8x8xf32>
    %63 = tpu.matmul %62, %53, %cst_22 {dimension_numbers = #tpu.dot_dimension_numbers<[1], [0], [0], [1], [0, 0, 1, 1], [], []>} : vector<8x8xbf16>, vector<8x8xbf16>, vector<8x8xf32> -> vector<8x8xf32>
    %64 = tpu.reciprocal %61 {approx = true} : vector<8x1xf32> -> vector<8x1xf32>
    %65 = vector.broadcast %64 : vector<8x1xf32> to vector<8x8xf32>
    %66 = arith.mulf %63, %65 : vector<8x8xf32>
    %67 = arith.truncf %66 : vector<8x8xf32> to vector<8x8xbf16>
    %68 = vector.extract_strided_slice %7 {offsets = [16, 0], sizes = [8, 32], strides = [1, 1]} : vector<32x32xbf16> to vector<8x32xbf16>
    %cst_23 = arith.constant dense<0.000000e+00> : vector<8x32xf32>
    %69 = tpu.matmul %67, %68, %cst_23 {dimension_numbers = #tpu.dot_dimension_numbers<[1], [0], [0], [1], [0, 0, 1, 1], [], []>} : vector<8x8xbf16>, vector<8x32xbf16>, vector<8x32xf32> -> vector<8x32xf32>
    %70 = arith.addf %50, %69 : vector<8x32xf32>
    %71 = vector.extract_strided_slice %6 {offsets = [0, 24], sizes = [8, 8], strides = [1, 1]} : vector<8x96xbf16> to vector<8x8xbf16>
    %72 = vector.extract_strided_slice %6 {offsets = [0, 56], sizes = [8, 8], strides = [1, 1]} : vector<8x96xbf16> to vector<8x8xbf16>
    %73 = vector.extract_strided_slice %6 {offsets = [0, 88], sizes = [8, 8], strides = [1, 1]} : vector<8x96xbf16> to vector<8x8xbf16>
    %cst_24 = arith.constant dense<0.000000e+00> : vector<8x8xf32>
    %74 = tpu.matmul %71, %72, %cst_24 {dimension_numbers = #tpu.dot_dimension_numbers<[1], [1], [0], [0], [0, 0, 1, 0], [], []>} : vector<8x8xbf16>, vector<8x8xbf16>, vector<8x8xf32> -> vector<8x8xf32>
    %cst_25 = arith.constant dense<0xFF800000> : vector<8xf32>
    %75 = vector.multi_reduction <maximumf>, %74, %cst_25 [1] : vector<8x8xf32> to vector<8xf32>
    %76 = vector.shape_cast %75 : vector<8xf32> to vector<8x1xf32>
    %77 = vector.broadcast %76 : vector<8x1xf32> to vector<8x8xf32>
    %78 = arith.subf %74, %77 : vector<8x8xf32>
    %79 = math.exp %78 : vector<8x8xf32>
    %cst_26 = arith.constant dense<0.000000e+00> : vector<8xf32>
    %80 = vector.multi_reduction <add>, %79, %cst_26 [1] : vector<8x8xf32> to vector<8xf32>
    %81 = vector.shape_cast %80 : vector<8xf32> to vector<8x1xf32>
    %82 = arith.truncf %79 : vector<8x8xf32> to vector<8x8xbf16>
    %cst_27 = arith.constant dense<0.000000e+00> : vector<8x8xf32>
    %83 = tpu.matmul %82, %73, %cst_27 {dimension_numbers = #tpu.dot_dimension_numbers<[1], [0], [0], [1], [0, 0, 1, 1], [], []>} : vector<8x8xbf16>, vector<8x8xbf16>, vector<8x8xf32> -> vector<8x8xf32>
    %84 = tpu.reciprocal %81 {approx = true} : vector<8x1xf32> -> vector<8x1xf32>
    %85 = vector.broadcast %84 : vector<8x1xf32> to vector<8x8xf32>
    %86 = arith.mulf %83, %85 : vector<8x8xf32>
    %87 = arith.truncf %86 : vector<8x8xf32> to vector<8x8xbf16>
    %88 = vector.extract_strided_slice %7 {offsets = [24, 0], sizes = [8, 32], strides = [1, 1]} : vector<32x32xbf16> to vector<8x32xbf16>
    %cst_28 = arith.constant dense<0.000000e+00> : vector<8x32xf32>
    %89 = tpu.matmul %87, %88, %cst_28 {dimension_numbers = #tpu.dot_dimension_numbers<[1], [0], [0], [1], [0, 0, 1, 1], [], []>} : vector<8x8xbf16>, vector<8x32xbf16>, vector<8x32xf32> -> vector<8x32xf32>
    %90 = arith.addf %70, %89 : vector<8x32xf32>
    %c0_29 = arith.constant 0 : index
    %c0_30 = arith.constant 0 : index
    %91 = vector.load %arg6[%c0_29, %c0_30] : memref<8x32xf32, #tpu.memory_space<vmem>>, vector<8x32xf32>
    tpu.vector_store %arg6[%c0_29, %c0_30], %90 {strides = array<i32>} : memref<8x32xf32, #tpu.memory_space<vmem>>, vector<8x32xf32>,
    return
  }
  func.func @transform_0(%arg0: i32) -> (i32, i32) {
    %c0_i32 = arith.constant 0 : i32
    %c0_i32_0 = arith.constant 0 : i32
    return %arg0, %c0_i32 : i32, i32
  }
  func.func @transform_1(%arg0: i32) -> (i32, i32) {
    %c0_i32 = arith.constant 0 : i32
    %c0_i32_0 = arith.constant 0 : i32
    %c0_i32_1 = arith.constant 0 : i32
    return %c0_i32, %c0_i32_0 : i32, i32
  }
  func.func @transform_2(%arg0: i32) -> (i32, i32) {
    %c0_i32 = arith.constant 0 : i32
    %c0_i32_0 = arith.constant 0 : i32
    %c0_i32_1 = arith.constant 0 : i32
    return %c0_i32, %c0_i32_0 : i32, i32
  }
  func.func @transform_3(%arg0: i32) -> (i32, i32) {
    %c0_i32 = arith.constant 0 : i32
    %c0_i32_0 = arith.constant 0 : i32
    %c0_i32_1 = arith.constant 0 : i32
    return %c0_i32, %c0_i32_0 : i32, i32
  }
  func.func @transform_4(%arg0: i32) -> (i32, i32) {
    %c0_i32 = arith.constant 0 : i32
    %c0_i32_0 = arith.constant 0 : i32
    %c0_i32_1 = arith.constant 0 : i32
    return %c0_i32, %c0_i32_0 : i32, i32
  }
  func.func @transform_5(%arg0: i32) -> (i32, i32) {
    %c0_i32 = arith.constant 0 : i32
    %c0_i32_0 = arith.constant 0 : i32
    return %arg0, %c0_i32 : i32, i32
  }
}

</mosaic_0001>

<llo_original>
// kernel: tpu_custom_call.1
$region0: #{tpu_custom_call.1}
  #allocation0 [shape = 'u32[]', space=smem, size = 0x4, offset = 0x4, fixed_abs, tag = 'smem constant byte address 0x4 - core index']
  #allocation1 [shape = 'u32[144,128]{1,0:T(1,128)}', space=vmem, size = 0x12000, scoped, tag = 'internal scratch']
  %s0 = inlined_call_operand.hbm [shape: bf16[16,32], index: 0, kind: input, shape index: {}]
  %s1 = inlined_call_operand.hbm [shape: bf16[32,96], index: 1, kind: input, shape index: {}]
  %s2 = inlined_call_operand.vmem [shape: f32[1,96], index: 2, kind: input, shape index: {}]
  %s3 = inlined_call_operand.hbm [shape: bf16[32,32], index: 3, kind: input, shape index: {}]
  %s4 = inlined_call_operand.vmem [shape: f32[1,32], index: 4, kind: input, shape index: {}]
  %s5 = inlined_call_operand.hbm [shape: f32[16,32], index: 5, kind: output, shape index: {}]
  %s6 = sld [smem:[#allocation0]]
  $region65: #{tpu_custom_call.1} parent=0
    _
  %s8 = ssub.s32 1, %s6
  %s9 = scalar_select 0, %s8, %s6
  $region1: #{tpu_custom_call.1} parent=0
    #allocation2 [shape = 'u8[4096]{0}', space=vmem, size = 0x1000, scoped, tag = 'input window, operand 0']
    #allocation3 [shape = 's32[2]{0}', space=sflag, size = 0x8, scoped, tag = 'scoped memory for tpu_custom_call.1']
    #allocation4 [shape = 's32[2]{0}', space=sflag, size = 0x8, scoped, tag = 'scoped memory for tpu_custom_call.1']
    #allocation5 [shape = 'u8[8192]{0}', space=vmem, size = 0x2000, scoped, tag = 'input window, operand 1, single buffered']
    #allocation6 [shape = 's32[1]{0}', space=sflag, size = 0x4, scoped, tag = 'scoped memory for tpu_custom_call.1']
    #allocation7 [shape = 'u8[8192]{0}', space=vmem, size = 0x2000, scoped, tag = 'input window, operand 3, single buffered']
    #allocation8 [shape = 'u8[8192]{0}', space=vmem, size = 0x2000, scoped, tag = 'output window, operand 0']
    %10 = vsyncpa [#allocation3], 0
    %s11 = scalar_lea.sflag [#allocation3], 1
    %12 = vsyncpa %s11, 0
    %13 = vsyncpa [#allocation6], 0
    %14 = vsyncpa [#allocation4], 0
    %s15 = scalar_lea.sflag [#allocation4], 1
    %16 = vsyncpa %s15, 0
    loop: start=0, step=1, limit=4
    $region2: #{tpu_custom_call.1} parent=1 // loop_pre_header
      _
    $region3: #{tpu_custom_call.1} parent=1 // loop_header
      %s18 = sphi 0, %s22
      %p19 = scmp.ge.s32.totalorder %s18, 4
      %s28 = sphi 0, %s30
      %s31 = sphi 0, %s28
      %s32 = sphi 0, %s31
      %s48 = sphi 0, %s32
      %s52 = sphi 0, %s52
      %s54 = sphi 0, %s52
      %s55 = sphi 0, %s54
      %s69 = sphi 0, %s55
      %s73 = sphi 0, %s73
      %s75 = sphi 0, %s73
      %s76 = sphi 0, %s75
      %s90 = sphi 0, %s76
      %s94 = sphi 0, %s94
      %s96 = sphi 0, %s94
      %s97 = sphi 0, %s96
      %s111 = sphi 0, %s97
      %s115 = sphi 0, %s115
      %s117 = sphi 0, %s115
      %s118 = sphi 0, %s117
      %s132 = sphi 0, %s118
      %s138 = sphi 0, %s140
      %s141 = sphi 0, %s138
      %s142 = sphi 0, %s141
      %s158 = sphi 0, %s142
    $region4: #{tpu_custom_call.1} parent=1 // loop_header_branch
      %21 = sbr.rel (%p19) target = $region8
    $region5: #{tpu_custom_call.1} parent=1 // loop_body
      %s23 = ssub.s32 %s18, 1
      %s24 = ssub.s32 %s18, 2
      %s25 = sadd.s32 %s18, 1
      %s26 = ssub.s32 %s18, %s25
      %p27 = scmp.eq.s32.totalorder %s26, 0
      %s29 = sadd.s32 %s28, 1
      %s30 = scalar_select %p27, %s28, %s29
      %p33 = pneg %p27
      %p34 = scmp.eq.s32.totalorder %s18, 1
      %p35 = por %p33, %p34
      %p36 = scmp.ne.s32.totalorder %s28, %s31
      %p37 = scmp.eq.s32.totalorder %s18, 0
      %p38 = por %p36, %p37
      %p39 = scmp.ne.s32.totalorder %s28, %s31
      %p40 = scmp.eq.s32.totalorder %s23, 1
      %p41 = por %p39, %p40
      %p42 = scmp.ne.s32.totalorder %s31, %s32
      %p43 = scmp.eq.s32.totalorder %s23, 0
      %p44 = por %p42, %p43
      %p45 = scmp.ne.s32.totalorder %s31, %s32
      %p46 = scmp.eq.s32.totalorder %s24, 1
      %p47 = por %p45, %p46
      %p49 = scmp.ne.s32.totalorder %s32, %s48
      %p50 = scmp.eq.s32.totalorder %s24, 0
      %p51 = por %p49, %p50
      %s53 = sadd.s32 %s52, 1
      %p56 = scmp.eq.s32.totalorder %s18, 1
      %p57 = scmp.ne.s32.totalorder %s52, %s54
      %p58 = scmp.eq.s32.totalorder %s18, 0
      %p59 = por %p57, %p58
      %p60 = scmp.ne.s32.totalorder %s52, %s54
      %p61 = scmp.eq.s32.totalorder %s23, 1
      %p62 = por %p60, %p61
      %p63 = scmp.ne.s32.totalorder %s54, %s55
      %p64 = scmp.eq.s32.totalorder %s23, 0
      %p65 = por %p63, %p64
      %p66 = scmp.ne.s32.totalorder %s54, %s55
      %p67 = scmp.eq.s32.totalorder %s24, 1
      %p68 = por %p66, %p67
      %p70 = scmp.ne.s32.totalorder %s55, %s69
      %p71 = scmp.eq.s32.totalorder %s24, 0
      %p72 = por %p70, %p71
      %s74 = sadd.s32 %s73, 1
      %p77 = scmp.eq.s32.totalorder %s18, 1
      %p78 = scmp.ne.s32.totalorder %s73, %s75
      %p79 = scmp.eq.s32.totalorder %s18, 0
      %p80 = por %p78, %p79
      %p81 = scmp.ne.s32.totalorder %s73, %s75
      %p82 = scmp.eq.s32.totalorder %s23, 1
      %p83 = por %p81, %p82
      %p84 = scmp.ne.s32.totalorder %s75, %s76
      %p85 = scmp.eq.s32.totalorder %s23, 0
      %p86 = por %p84, %p85
      %p87 = scmp.ne.s32.totalorder %s75, %s76
      %p88 = scmp.eq.s32.totalorder %s24, 1
      %p89 = por %p87, %p88
      %p91 = scmp.ne.s32.totalorder %s76, %s90
      %p92 = scmp.eq.s32.totalorder %s24, 0
      %p93 = por %p91, %p92
      %s95 = sadd.s32 %s94, 1
      %p98 = scmp.eq.s32.totalorder %s18, 1
      %p99 = scmp.ne.s32.totalorder %s94, %s96
      %p100 = scmp.eq.s32.totalorder %s18, 0
      %p101 = por %p99, %p100
      %p102 = scmp.ne.s32.totalorder %s94, %s96
      %p103 = scmp.eq.s32.totalorder %s23, 1
      %p104 = por %p102, %p103
      %p105 = scmp.ne.s32.totalorder %s96, %s97
      %p106 = scmp.eq.s32.totalorder %s23, 0
      %p107 = por %p105, %p106
      %p108 = scmp.ne.s32.totalorder %s96, %s97
      %p109 = scmp.eq.s32.totalorder %s24, 1
      %p110 = por %p108, %p109
      %p112 = scmp.ne.s32.totalorder %s97, %s111
      %p113 = scmp.eq.s32.totalorder %s24, 0
      %p114 = por %p112, %p113
      %s116 = sadd.s32 %s115, 1
      %p119 = scmp.eq.s32.totalorder %s18, 1
      %p120 = scmp.ne.s32.totalorder %s115, %s117
      %p121 = scmp.eq.s32.totalorder %s18, 0
      %p122 = por %p120, %p121
      %p123 = scmp.ne.s32.totalorder %s115, %s117
      %p124 = scmp.eq.s32.totalorder %s23, 1
      %p125 = por %p123, %p124
      %p126 = scmp.ne.s32.totalorder %s117, %s118
      %p127 = scmp.eq.s32.totalorder %s23, 0
      %p128 = por %p126, %p127
      %p129 = scmp.ne.s32.totalorder %s117, %s118
      %p130 = scmp.eq.s32.totalorder %s24, 1
      %p131 = por %p129, %p130
      %p133 = scmp.ne.s32.totalorder %s118, %s132
      %p134 = scmp.eq.s32.totalorder %s24, 0
      %p135 = por %p133, %p134
      %s136 = ssub.s32 %s18, %s25
      %p137 = scmp.eq.s32.totalorder %s136, 0
      %s139 = sadd.s32 %s138, 1
      %s140 = scalar_select %p137, %s138, %s139
      %p143 = pneg %p137
      %p144 = scmp.eq.s32.totalorder %s18, 1
      %p145 = por %p143, %p144
      %p146 = scmp.ne.s32.totalorder %s138, %s141
      %p147 = scmp.eq.s32.totalorder %s18, 0
      %p148 = por %p146, %p147
      %p149 = scmp.ne.s32.totalorder %s138, %s141
      %p150 = scmp.eq.s32.totalorder %s23, 1
      %p151 = por %p149, %p150
      %p152 = scmp.ne.s32.totalorder %s141, %s142
      %p153 = scmp.eq.s32.totalorder %s23, 0
      %p154 = por %p152, %p153
      %p155 = scmp.ne.s32.totalorder %s141, %s142
      %p156 = scmp.eq.s32.totalorder %s24, 1
      %p157 = por %p155, %p156
      %p159 = scmp.ne.s32.totalorder %s142, %s158
      %p160 = scmp.eq.s32.totalorder %s24, 0
      %p161 = por %p159, %p160
      %p162 = scmp.le.s32.totalorder 1, %s18
      %p163 = scmp.lt.s32.totalorder %s18, 3
      %p164 = pnand %p162, %p163
      %p165 = pneg %p164
      // Predicated region
      $region9: #{tpu_custom_call.1} parent=5 // pred_check
        _
      $region10: #{tpu_custom_call.1} parent=5 // pred_check_branch
        %167 = sbr.rel (%p164) target = $region12
      $region11: #{tpu_custom_call.1} parent=5 // pred_region
        %s168 = ssub.s32 %s18, 1
        // Predicated region
        $region13: #{tpu_custom_call.1} parent=11 // pred_check
          %p169 = pneg %p65
        $region14: #{tpu_custom_call.1} parent=11 // pred_check_branch
          %171 = sbr.rel (%p169) target = $region16
        $region15: #{tpu_custom_call.1} parent=11 // pred_region
          %s173 = ssub.s32 256, 256
          %174 = vsyncadd [#allocation6], %s173
          %s175 = sshll.u32 [#allocation5], 4
          %s176 = int_to_ptr.vmem [resolvable:$true] %s175
          %181 = dma.hbm_to_vmem [thread:$0]  %s1, 256, %s176, [#allocation6], 64, 64, 4
        $region16: #{tpu_custom_call.1} parent=11 // pred_fallthru
          _
        // Predicated region
        $region17: #{tpu_custom_call.1} parent=11 // pred_check
          %p182 = pneg %p86
        $region18: #{tpu_custom_call.1} parent=11 // pred_check_branch
          %184 = sbr.rel (%p182) target = $region20
        $region19: #{tpu_custom_call.1} parent=11 // pred_region
          _
        $region20: #{tpu_custom_call.1} parent=11 // pred_fallthru
          _
        // Predicated region
        $region21: #{tpu_custom_call.1} parent=11 // pred_check
          %p185 = pneg %p107
        $region22: #{tpu_custom_call.1} parent=11 // pred_check_branch
          %187 = sbr.rel (%p185) target = $region24
        $region23: #{tpu_custom_call.1} parent=11 // pred_region
          %s189 = ssub.s32 256, 256
          %190 = vsyncadd [#allocation6], %s189
          %s191 = sshll.u32 [#allocation7], 4
          %s192 = int_to_ptr.vmem [resolvable:$true] %s191
          %197 = dma.hbm_to_vmem [thread:$0]  %s3, 256, %s192, [#allocation6], 64, 64, 4
        $region24: #{tpu_custom_call.1} parent=11 // pred_fallthru
          _
        // Predicated region
        $region25: #{tpu_custom_call.1} parent=11 // pred_check
          %p198 = pneg %p128
        $region26: #{tpu_custom_call.1} parent=11 // pred_check_branch
          %200 = sbr.rel (%p198) target = $region28
        $region27: #{tpu_custom_call.1} parent=11 // pred_region
          _
        $region28: #{tpu_custom_call.1} parent=11 // pred_fallthru
          _
      $region12: #{tpu_custom_call.1} parent=5 // pred_fallthru
        _
      %p201 = scmp.lt.s32.totalorder %s18, 2
      // Predicated region
      $region29: #{tpu_custom_call.1} parent=5 // pred_check
        %p202 = pneg %p201
      $region30: #{tpu_custom_call.1} parent=5 // pred_check_branch
        %204 = sbr.rel (%p202) target = $region32
      $region31: #{tpu_custom_call.1} parent=5 // pred_region
        // Predicated region
        $region33: #{tpu_custom_call.1} parent=31 // pred_check
          %p205 = pneg %p38
        $region34: #{tpu_custom_call.1} parent=31 // pred_check_branch
          %207 = sbr.rel (%p205) target = $region36
        $region35: #{tpu_custom_call.1} parent=31 // pred_region
          %s208 = sand.u32 %s28, 1
          %s209 = scalar_lea.sflag [#allocation3], %s208
          %s210 = sand.u32 %s28, 1
          %s211 = smul.addr %s210, 4
          %s212 = scalar_lea.vmem [#allocation2], %s211
          %s214 = ssub.s32 64, 64
          %215 = vsyncadd %s209, %s214
          %s216 = smul.addr %s18, 64
          %s217 = scalar_lea.hbm %s0, %s216
          %s219 = sshll.u32 %s212, 4
          %s220 = int_to_ptr.vmem [resolvable:$true] %s219
          %222 = dma.hbm_to_vmem [thread:$0]  %s217, 64, %s220, %s209
        $region36: #{tpu_custom_call.1} parent=31 // pred_fallthru
          _
      $region32: #{tpu_custom_call.1} parent=5 // pred_fallthru
        _
      %p223 = scmp.le.s32.totalorder 1, %s18
      %p224 = scmp.lt.s32.totalorder %s18, 3
      %p225 = pnand %p223, %p224
      %p226 = pneg %p225
      // Predicated region
      $region37: #{tpu_custom_call.1} parent=5 // pred_check
        _
      $region38: #{tpu_custom_call.1} parent=5 // pred_check_branch
        %228 = sbr.rel (%p225) target = $region40
      $region39: #{tpu_custom_call.1} parent=5 // pred_region
        %s229 = ssub.s32 %s18, 1
        %s230 = sand.u32 %s31, 1
        %s231 = scalar_lea.sflag [#allocation3], %s230
        %s232 = sand.u32 %s31, 1
        %s233 = smul.addr %s232, 4
        %s234 = scalar_lea.vmem [#allocation2], %s233
        // Predicated region
        $region41: #{tpu_custom_call.1} parent=39 // pred_check
          %p235 = pneg %p44
        $region42: #{tpu_custom_call.1} parent=39 // pred_check_branch
          %237 = sbr.rel (%p235) target = $region44
        $region43: #{tpu_custom_call.1} parent=39 // pred_region
          %238 = dma.done %s231, 64
        $region44: #{tpu_custom_call.1} parent=39 // pred_fallthru
          _
        // Predicated region
        $region45: #{tpu_custom_call.1} parent=39 // pred_check
          %p239 = pneg %p65
        $region46: #{tpu_custom_call.1} parent=39 // pred_check_branch
          %241 = sbr.rel (%p239) target = $region48
        $region47: #{tpu_custom_call.1} parent=39 // pred_region
          %242 = dma.done [#allocation6], 256
        $region48: #{tpu_custom_call.1} parent=39 // pred_fallthru
          _
        // Predicated region
        $region49: #{tpu_custom_call.1} parent=39 // pred_check
          %p243 = pneg %p107
        $region50: #{tpu_custom_call.1} parent=39 // pred_check_branch
          %245 = sbr.rel (%p243) target = $region52
        $region51: #{tpu_custom_call.1} parent=39 // pred_region
          %246 = dma.done [#allocation6], 256
        $region52: #{tpu_custom_call.1} parent=39 // pred_fallthru
          _
        %s247 = sand.u32 %s31, 1
        %s248 = scalar_lea.sflag [#allocation3], %s247
        %s249 = sand.u32 %s31, 1
        %s250 = smul.addr %s249, 4
        %s251 = scalar_lea.vmem [#allocation2], %s250
        %p252 = pneg %p44
        %p253 = pneg %p41
        %p254 = pneg %p65
        %p255 = pneg %p62
        %p256 = pneg %p86
        %p257 = pneg %p83
        %p258 = pneg %p107
        %p259 = pneg %p104
        %p260 = pneg %p128
        %p261 = pneg %p125
        %p262 = pneg %p154
        %p263 = pneg %p151
        %s264 = sand.u32 %s141, 1
        %s265 = scalar_lea.sflag [#allocation4], %s264
        %s266 = sand.u32 %s141, 1
        %s267 = smul.addr %s266, 8
        %s268 = scalar_lea.vmem [#allocation8], %s267
        %v270 = vld [vmem:[%s234] sm:$0xf]
        %v271 = vld [vmem:[#allocation5] sm:$0xf]
        %v272 = vld [vmem:[#allocation5 + $0x4] sm:$0xf]
        %v273 = vld [vmem:[#allocation5 + $0x8] sm:$0xf]
        %v274 = vld [vmem:[#allocation5 + $0xc] sm:$0xf]
        %v275 = vld [vmem:[%s2] sm:$0x1]
        %v277 = vlaneseq
        %v278 = vshrl.u32 %v277, 7
        %v279 = vsub.s32 0, %v278
        %v280 = vrot.slane %v275, %v279
        %v286 = vunpack.c.l.b16 %v271
        %v287 = vunpack.c.l.b16 %v272
        %v288 = vunpack.c.l.b16 %v273
        %v289 = vunpack.c.l.b16 %v274
        %v290 = vpack.c.b16 %v287, %v286
        %v291 = vpack.c.b16 %v289, %v288
        %vm294 = vcmask 261120
        %v296 = vsel %vm294, %v270, 0
        %298 = vmatprep.subr.bf16.mxu0 0
        %299 = vmatpush1.bf16.msra.mxu0 %v290
        %300 = vmatprep.subr.bf16.mxu0 0
        %301 = vmatpush1.bf16.msra.mxu0 %v291
        %302 = vmatprep.subr.bf16.mxu0 0
        %303 = vmatpush1.bf16.msra.mxu0 0
        %304 = vmatprep.subr.bf16.mxu0 0
        %305 = vmatpush1.bf16.msra.mxu0 0
        %306 = vmatprep.subr.bf16.mxu0 0
        %307 = vmatpush1.bf16.msra.mxu0 0
        %308 = vmatprep.subr.bf16.mxu0 0
        %309 = vmatpush1.bf16.msra.mxu0 0
        %310 = vmatprep.subr.bf16.mxu0 0
        %311 = vmatpush1.bf16.msra.mxu0 0
        %312 = vmatprep.subr.bf16.mxu0 0
        %313 = vmatpush1.bf16.msra.mxu0 0
        %314 = vmatprep.subr.bf16.mxu0 0
        %315 = vmatpush1.bf16.msra.mxu0 0
        %316 = vmatprep.subr.bf16.mxu0 0
        %317 = vmatpush1.bf16.msra.mxu0 0
        %318 = vmatprep.subr.bf16.mxu0 0
        %319 = vmatpush1.bf16.msra.mxu0 0
        %320 = vmatprep.subr.bf16.mxu0 0
        %321 = vmatpush1.bf16.msra.mxu0 0
        %322 = vmatprep.subr.bf16.mxu0 0
        %323 = vmatpush1.bf16.msra.mxu0 0
        %324 = vmatprep.subr.bf16.mxu0 0
        %325 = vmatpush1.bf16.msra.mxu0 0
        %326 = vmatprep.subr.bf16.mxu0 0
        %327 = vmatpush1.bf16.msra.mxu0 0
        %328 = vmatprep.subr.bf16.mxu0 0
        %329 = vmatpush1.bf16.msra.mxu0 0
        %330 = vmatprep.mubr.bf16.mxu0 0
        %331 = vmatmul.mubr.bf16.gmra.mrb[0].mxu0 %v296
        %v332 = vpop.f32.mrb[0].mxu0
        %v333 = vadd.f32 %v280, %v332
        %v334 = vpop.f32.mrb[0].mxu0
        %v335 = vpop.f32.mrb[0].mxu0
        %v336 = vpop.f32.mrb[0].mxu0
        %337 = vdwg.mxu0
        %v338 = vpack.c.bf16 %v333, %v333
        %v339 = vld [vmem:[#allocation7] sm:$0xf]
        %v340 = vld [vmem:[#allocation7 + $0x4] sm:$0xf]
        %v341 = vld [vmem:[#allocation7 + $0x8] sm:$0xf]
        %v342 = vld [vmem:[#allocation7 + $0xc] sm:$0xf]
        %v343 = vld [vmem:[%s4] sm:$0x1]
        %v345 = vlaneseq
        %v346 = vshrl.u32 %v345, 7
        %v347 = vsub.s32 0, %v346
        %v348 = vrot.slane %v343, %v347
        %351 = vrot.lane.b32.xlu0 %v338, 96
        %v352 = vpop.permute.xlu0 %351
        %vm353 = vcmask 64512
        %v355 = vsel %vm353, %v338, 0
        %v358 = vsel %vm353, %v352, 0
        %360 = vmatprep.subr.bf16.mxu0 0
        %361 = vmatpush1.bf16.xpose.msra.mxu0 %v358
        %362 = vmatprep.subr.bf16.mxu0 0
        %363 = vmatpush1.bf16.xpose.msra.mxu0 0
        %364 = vmatprep.subr.bf16.mxu0 0
        %365 = vmatpush1.bf16.xpose.msra.mxu0 0
        %366 = vmatprep.subr.bf16.mxu0 0
        %367 = vmatpush1.bf16.xpose.msra.mxu0 0
        %368 = vmatprep.subr.bf16.mxu0 0
        %369 = vmatpush1.bf16.xpose.msra.mxu0 0
        %370 = vmatprep.subr.bf16.mxu0 0
        %371 = vmatpush1.bf16.xpose.msra.mxu0 0
        %372 = vmatprep.subr.bf16.mxu0 0
        %373 = vmatpush1.bf16.xpose.msra.mxu0 0
        %374 = vmatprep.subr.bf16.mxu0 0
        %375 = vmatpush1.bf16.xpose.msra.mxu0 0
        %376 = vmatprep.subr.bf16.mxu0 0
        %377 = vmatpush1.bf16.xpose.msra.mxu0 0
        %378 = vmatprep.subr.bf16.mxu0 0
        %379 = vmatpush1.bf16.xpose.msra.mxu0 0
        %380 = vmatprep.subr.bf16.mxu0 0
        %381 = vmatpush1.bf16.xpose.msra.mxu0 0
        %382 = vmatprep.subr.bf16.mxu0 0
        %383 = vmatpush1.bf16.xpose.msra.mxu0 0
        %384 = vmatprep.subr.bf16.mxu0 0
        %385 = vmatpush1.bf16.xpose.msra.mxu0 0
        %386 = vmatprep.subr.bf16.mxu0 0
        %387 = vmatpush1.bf16.xpose.msra.mxu0 0
        %388 = vmatprep.subr.bf16.mxu0 0
        %389 = vmatpush1.bf16.xpose.msra.mxu0 0
        %390 = vmatprep.subr.bf16.mxu0 0
        %391 = vmatpush1.bf16.xpose.msra.mxu0 0
        %392 = vmatprep.mubr.bf16.mxu0 0
        %393 = vmatmul.mubr.bf16.gmra.mrb[0].mxu0 %v355
        %v394 = vpop.f32.mrb[0].mxu0
        %v395 = vadd.f32 0.0, %v394
        %v396 = vpop.f32.mrb[0].mxu0
        %v397 = vpop.f32.mrb[0].mxu0
        %v398 = vpop.f32.mrb[0].mxu0
        %399 = vdwg.mxu0
        %v400 = vsel %vm353, %v395, -inf
        %401 = vmax.xlane.f32.xlu0 %v400
        %v402 = vpop.xlane.xlu0 %401
        %v403 = vsub.f32 %v395, %v402
        %v404 = vmul.f32 %v403, 1.442695
        %v405 = vpow.pop %v404
        %v406 = vsel %vm353, %v405, 0.0
        %407 = vadd.xlane.f32.xlu0 %v406
        %v408 = vpop.xlane.xlu0 %407
        %v409 = vpack.c.bf16 %v405, %v405
        %410 = vrot.lane.b32.xlu0 %v338, 64
        %v411 = vpop.permute.xlu0 %410
        %v413 = vsel %vm353, %v409, 0
        %vm415 = vcmask 1043456
        %v417 = vsel %vm415, %v411, 0
        %419 = vmatprep.subr.bf16.mxu0 0
        %420 = vmatpush1.bf16.msra.mxu0 %v417
        %421 = vmatprep.subr.bf16.mxu0 0
        %422 = vmatpush1.bf16.msra.mxu0 0
        %423 = vmatprep.subr.bf16.mxu0 0
        %424 = vmatpush1.bf16.msra.mxu0 0
        %425 = vmatprep.subr.bf16.mxu0 0
        %426 = vmatpush1.bf16.msra.mxu0 0
        %427 = vmatprep.subr.bf16.mxu0 0
        %428 = vmatpush1.bf16.msra.mxu0 0
        %429 = vmatprep.subr.bf16.mxu0 0
        %430 = vmatpush1.bf16.msra.mxu0 0
        %431 = vmatprep.subr.bf16.mxu0 0
        %432 = vmatpush1.bf16.msra.mxu0 0
        %433 = vmatprep.subr.bf16.mxu0 0
        %434 = vmatpush1.bf16.msra.mxu0 0
        %435 = vmatprep.subr.bf16.mxu0 0
        %436 = vmatpush1.bf16.msra.mxu0 0
        %437 = vmatprep.subr.bf16.mxu0 0
        %438 = vmatpush1.bf16.msra.mxu0 0
        %439 = vmatprep.subr.bf16.mxu0 0
        %440 = vmatpush1.bf16.msra.mxu0 0
        %441 = vmatprep.subr.bf16.mxu0 0
        %442 = vmatpush1.bf16.msra.mxu0 0
        %443 = vmatprep.subr.bf16.mxu0 0
        %444 = vmatpush1.bf16.msra.mxu0 0
        %445 = vmatprep.subr.bf16.mxu0 0
        %446 = vmatpush1.bf16.msra.mxu0 0
        %447 = vmatprep.subr.bf16.mxu0 0
        %448 = vmatpush1.bf16.msra.mxu0 0
        %449 = vmatprep.subr.bf16.mxu0 0
        %450 = vmatpush1.bf16.msra.mxu0 0
        %451 = vmatprep.mubr.bf16.mxu0 0
        %452 = vmatmul.mubr.bf16.gmra.mrb[0].mxu0 %v413
        %v453 = vpop.f32.mrb[0].mxu0
        %v454 = vadd.f32 0.0, %v453
        %v455 = vpop.f32.mrb[0].mxu0
        %v456 = vpop.f32.mrb[0].mxu0
        %v457 = vpop.f32.mrb[0].mxu0
        %458 = vdwg.mxu0
        %v459 = vrcp.pop %v408
        %v460 = vmul.f32 %v454, %v459
        %v461 = vpack.c.bf16 %v460, %v460
        %v463 = vsel %vm353, %v461, 0
        %v466 = vsel %vm415, %v339, 0
        %468 = vmatprep.subr.bf16.mxu0 0
        %469 = vmatpush1.bf16.msra.mxu0 %v466
        %470 = vmatprep.subr.bf16.mxu0 0
        %471 = vmatpush1.bf16.msra.mxu0 0
        %472 = vmatprep.subr.bf16.mxu0 0
        %473 = vmatpush1.bf16.msra.mxu0 0
        %474 = vmatprep.subr.bf16.mxu0 0
        %475 = vmatpush1.bf16.msra.mxu0 0
        %476 = vmatprep.subr.bf16.mxu0 0
        %477 = vmatpush1.bf16.msra.mxu0 0
        %478 = vmatprep.subr.bf16.mxu0 0
        %479 = vmatpush1.bf16.msra.mxu0 0
        %480 = vmatprep.subr.bf16.mxu0 0
        %481 = vmatpush1.bf16.msra.mxu0 0
        %482 = vmatprep.subr.bf16.mxu0 0
        %483 = vmatpush1.bf16.msra.mxu0 0
        %484 = vmatprep.subr.bf16.mxu0 0
        %485 = vmatpush1.bf16.msra.mxu0 0
        %486 = vmatprep.subr.bf16.mxu0 0
        %487 = vmatpush1.bf16.msra.mxu0 0
        %488 = vmatprep.subr.bf16.mxu0 0
        %489 = vmatpush1.bf16.msra.mxu0 0
        %490 = vmatprep.subr.bf16.mxu0 0
        %491 = vmatpush1.bf16.msra.mxu0 0
        %492 = vmatprep.subr.bf16.mxu0 0
        %493 = vmatpush1.bf16.msra.mxu0 0
        %494 = vmatprep.subr.bf16.mxu0 0
        %495 = vmatpush1.bf16.msra.mxu0 0
        %496 = vmatprep.subr.bf16.mxu0 0
        %497 = vmatpush1.bf16.msra.mxu0 0
        %498 = vmatprep.subr.bf16.mxu0 0
        %499 = vmatpush1.bf16.msra.mxu0 0
        %500 = vmatprep.mubr.bf16.mxu0 0
        %501 = vmatmul.mubr.bf16.gmra.mrb[0].mxu0 %v463
        %v502 = vpop.f32.mrb[0].mxu0
        %v503 = vadd.f32 0.0, %v502
        %v504 = vpop.f32.mrb[0].mxu0
        %v505 = vpop.f32.mrb[0].mxu0
        %v506 = vpop.f32.mrb[0].mxu0
        %507 = vdwg.mxu0
        %v508 = vadd.f32 %v348, %v503
        %509 = vrot.lane.b32.xlu0 %v338, 120
        %v510 = vpop.permute.xlu0 %509
        %511 = vrot.lane.b32.xlu0 %v338, 88
        %v512 = vpop.permute.xlu0 %511
        %v514 = vsel %vm353, %v510, 0
        %v517 = vsel %vm353, %v512, 0
        %519 = vmatprep.subr.bf16.mxu0 0
        %520 = vmatpush1.bf16.xpose.msra.mxu0 %v517
        %521 = vmatprep.subr.bf16.mxu0 0
        %522 = vmatpush1.bf16.xpose.msra.mxu0 0
        %523 = vmatprep.subr.bf16.mxu0 0
        %524 = vmatpush1.bf16.xpose.msra.mxu0 0
        %525 = vmatprep.subr.bf16.mxu0 0
        %526 = vmatpush1.bf16.xpose.msra.mxu0 0
        %527 = vmatprep.subr.bf16.mxu0 0
        %528 = vmatpush1.bf16.xpose.msra.mxu0 0
        %529 = vmatprep.subr.bf16.mxu0 0
        %530 = vmatpush1.bf16.xpose.msra.mxu0 0
        %531 = vmatprep.subr.bf16.mxu0 0
        %532 = vmatpush1.bf16.xpose.msra.mxu0 0
        %533 = vmatprep.subr.bf16.mxu0 0
        %534 = vmatpush1.bf16.xpose.msra.mxu0 0
        %535 = vmatprep.subr.bf16.mxu0 0
        %536 = vmatpush1.bf16.xpose.msra.mxu0 0
        %537 = vmatprep.subr.bf16.mxu0 0
        %538 = vmatpush1.bf16.xpose.msra.mxu0 0
        %539 = vmatprep.subr.bf16.mxu0 0
        %540 = vmatpush1.bf16.xpose.msra.mxu0 0
        %541 = vmatprep.subr.bf16.mxu0 0
        %542 = vmatpush1.bf16.xpose.msra.mxu0 0
        %543 = vmatprep.subr.bf16.mxu0 0
        %544 = vmatpush1.bf16.xpose.msra.mxu0 0
        %545 = vmatprep.subr.bf16.mxu0 0
        %546 = vmatpush1.bf16.xpose.msra.mxu0 0
        %547 = vmatprep.subr.bf16.mxu0 0
        %548 = vmatpush1.bf16.xpose.msra.mxu0 0
        %549 = vmatprep.subr.bf16.mxu0 0
        %550 = vmatpush1.bf16.xpose.msra.mxu0 0
        %551 = vmatprep.mubr.bf16.mxu0 0
        %552 = vmatmul.mubr.bf16.gmra.mrb[0].mxu0 %v514
        %v553 = vpop.f32.mrb[0].mxu0
        %v554 = vadd.f32 0.0, %v553
        %v555 = vpop.f32.mrb[0].mxu0
        %v556 = vpop.f32.mrb[0].mxu0
        %v557 = vpop.f32.mrb[0].mxu0
        %558 = vdwg.mxu0
        %v559 = vsel %vm353, %v554, -inf
        %560 = vmax.xlane.f32.xlu0 %v559
        %v561 = vpop.xlane.xlu0 %560
        %v562 = vsub.f32 %v554, %v561
        %v563 = vmul.f32 %v562, 1.442695
        %v564 = vpow.pop %v563
        %v565 = vsel %vm353, %v564, 0.0
        %566 = vadd.xlane.f32.xlu0 %v565
        %v567 = vpop.xlane.xlu0 %566
        %v568 = vpack.c.bf16 %v564, %v564
        %569 = vrot.lane.b32.xlu0 %v338, 56
        %v570 = vpop.permute.xlu0 %569
        %v572 = vsel %vm353, %v568, 0
        %v575 = vsel %vm415, %v570, 0
        %577 = vmatprep.subr.bf16.mxu0 0
        %578 = vmatpush1.bf16.msra.mxu0 %v575
        %579 = vmatprep.subr.bf16.mxu0 0
        %580 = vmatpush1.bf16.msra.mxu0 0
        %581 = vmatprep.subr.bf16.mxu0 0
        %582 = vmatpush1.bf16.msra.mxu0 0
        %583 = vmatprep.subr.bf16.mxu0 0
        %584 = vmatpush1.bf16.msra.mxu0 0
        %585 = vmatprep.subr.bf16.mxu0 0
        %586 = vmatpush1.bf16.msra.mxu0 0
        %587 = vmatprep.subr.bf16.mxu0 0
        %588 = vmatpush1.bf16.msra.mxu0 0
        %589 = vmatprep.subr.bf16.mxu0 0
        %590 = vmatpush1.bf16.msra.mxu0 0
        %591 = vmatprep.subr.bf16.mxu0 0
        %592 = vmatpush1.bf16.msra.mxu0 0
        %593 = vmatprep.subr.bf16.mxu0 0
        %594 = vmatpush1.bf16.msra.mxu0 0
        %595 = vmatprep.subr.bf16.mxu0 0
        %596 = vmatpush1.bf16.msra.mxu0 0
        %597 = vmatprep.subr.bf16.mxu0 0
        %598 = vmatpush1.bf16.msra.mxu0 0
        %599 = vmatprep.subr.bf16.mxu0 0
        %600 = vmatpush1.bf16.msra.mxu0 0
        %601 = vmatprep.subr.bf16.mxu0 0
        %602 = vmatpush1.bf16.msra.mxu0 0
        %603 = vmatprep.subr.bf16.mxu0 0
        %604 = vmatpush1.bf16.msra.mxu0 0
        %605 = vmatprep.subr.bf16.mxu0 0
        %606 = vmatpush1.bf16.msra.mxu0 0
        %607 = vmatprep.subr.bf16.mxu0 0
        %608 = vmatpush1.bf16.msra.mxu0 0
        %609 = vmatprep.mubr.bf16.mxu0 0
        %610 = vmatmul.mubr.bf16.gmra.mrb[0].mxu0 %v572
        %v611 = vpop.f32.mrb[0].mxu0
        %v612 = vadd.f32 0.0, %v611
        %v613 = vpop.f32.mrb[0].mxu0
        %v614 = vpop.f32.mrb[0].mxu0
        %v615 = vpop.f32.mrb[0].mxu0
        %616 = vdwg.mxu0
        %v617 = vrcp.pop %v567
        %v618 = vmul.f32 %v612, %v617
        %v619 = vpack.c.bf16 %v618, %v618
        %v621 = vsel %vm353, %v619, 0
        %v624 = vsel %vm415, %v340, 0
        %626 = vmatprep.subr.bf16.mxu0 0
        %627 = vmatpush1.bf16.msra.mxu0 %v624
        %628 = vmatprep.subr.bf16.mxu0 0
        %629 = vmatpush1.bf16.msra.mxu0 0
        %630 = vmatprep.subr.bf16.mxu0 0
        %631 = vmatpush1.bf16.msra.mxu0 0
        %632 = vmatprep.subr.bf16.mxu0 0
        %633 = vmatpush1.bf16.msra.mxu0 0
        %634 = vmatprep.subr.bf16.mxu0 0
        %635 = vmatpush1.bf16.msra.mxu0 0
        %636 = vmatprep.subr.bf16.mxu0 0
        %637 = vmatpush1.bf16.msra.mxu0 0
        %638 = vmatprep.subr.bf16.mxu0 0
        %639 = vmatpush1.bf16.msra.mxu0 0
        %640 = vmatprep.subr.bf16.mxu0 0
        %641 = vmatpush1.bf16.msra.mxu0 0
        %642 = vmatprep.subr.bf16.mxu0 0
        %643 = vmatpush1.bf16.msra.mxu0 0
        %644 = vmatprep.subr.bf16.mxu0 0
        %645 = vmatpush1.bf16.msra.mxu0 0
        %646 = vmatprep.subr.bf16.mxu0 0
        %647 = vmatpush1.bf16.msra.mxu0 0
        %648 = vmatprep.subr.bf16.mxu0 0
        %649 = vmatpush1.bf16.msra.mxu0 0
        %650 = vmatprep.subr.bf16.mxu0 0
        %651 = vmatpush1.bf16.msra.mxu0 0
        %652 = vmatprep.subr.bf16.mxu0 0
        %653 = vmatpush1.bf16.msra.mxu0 0
        %654 = vmatprep.subr.bf16.mxu0 0
        %655 = vmatpush1.bf16.msra.mxu0 0
        %656 = vmatprep.subr.bf16.mxu0 0
        %657 = vmatpush1.bf16.msra.mxu0 0
        %658 = vmatprep.mubr.bf16.mxu0 0
        %659 = vmatmul.mubr.bf16.gmra.mrb[0].mxu0 %v621
        %v660 = vpop.f32.mrb[0].mxu0
        %v661 = vadd.f32 0.0, %v660
        %v662 = vpop.f32.mrb[0].mxu0
        %v663 = vpop.f32.mrb[0].mxu0
        %v664 = vpop.f32.mrb[0].mxu0
        %665 = vdwg.mxu0
        %v666 = vadd.f32 %v508, %v661
        %667 = vrot.lane.b32.xlu0 %v338, 112
        %v668 = vpop.permute.xlu0 %667
        %669 = vrot.lane.b32.xlu0 %v338, 80
        %v670 = vpop.permute.xlu0 %669
        %v672 = vsel %vm353, %v668, 0
        %v675 = vsel %vm353, %v670, 0
        %677 = vmatprep.subr.bf16.mxu0 0
        %678 = vmatpush1.bf16.xpose.msra.mxu0 %v675
        %679 = vmatprep.subr.bf16.mxu0 0
        %680 = vmatpush1.bf16.xpose.msra.mxu0 0
        %681 = vmatprep.subr.bf16.mxu0 0
        %682 = vmatpush1.bf16.xpose.msra.mxu0 0
        %683 = vmatprep.subr.bf16.mxu0 0
        %684 = vmatpush1.bf16.xpose.msra.mxu0 0
        %685 = vmatprep.subr.bf16.mxu0 0
        %686 = vmatpush1.bf16.xpose.msra.mxu0 0
        %687 = vmatprep.subr.bf16.mxu0 0
        %688 = vmatpush1.bf16.xpose.msra.mxu0 0
        %689 = vmatprep.subr.bf16.mxu0 0
        %690 = vmatpush1.bf16.xpose.msra.mxu0 0
        %691 = vmatprep.subr.bf16.mxu0 0
        %692 = vmatpush1.bf16.xpose.msra.mxu0 0
        %693 = vmatprep.subr.bf16.mxu0 0
        %694 = vmatpush1.bf16.xpose.msra.mxu0 0
        %695 = vmatprep.subr.bf16.mxu0 0
        %696 = vmatpush1.bf16.xpose.msra.mxu0 0
        %697 = vmatprep.subr.bf16.mxu0 0
        %698 = vmatpush1.bf16.xpose.msra.mxu0 0
        %699 = vmatprep.subr.bf16.mxu0 0
        %700 = vmatpush1.bf16.xpose.msra.mxu0 0
        %701 = vmatprep.subr.bf16.mxu0 0
        %702 = vmatpush1.bf16.xpose.msra.mxu0 0
        %703 = vmatprep.subr.bf16.mxu0 0
        %704 = vmatpush1.bf16.xpose.msra.mxu0 0
        %705 = vmatprep.subr.bf16.mxu0 0
        %706 = vmatpush1.bf16.xpose.msra.mxu0 0
        %707 = vmatprep.subr.bf16.mxu0 0
        %708 = vmatpush1.bf16.xpose.msra.mxu0 0
        %709 = vmatprep.mubr.bf16.mxu0 0
        %710 = vmatmul.mubr.bf16.gmra.mrb[0].mxu0 %v672
        %v711 = vpop.f32.mrb[0].mxu0
        %v712 = vadd.f32 0.0, %v711
        %v713 = vpop.f32.mrb[0].mxu0
        %v714 = vpop.f32.mrb[0].mxu0
        %v715 = vpop.f32.mrb[0].mxu0
        %716 = vdwg.mxu0
        %v717 = vsel %vm353, %v712, -inf
        %718 = vmax.xlane.f32.xlu0 %v717
        %v719 = vpop.xlane.xlu0 %718
        %v720 = vsub.f32 %v712, %v719
        %v721 = vmul.f32 %v720, 1.442695
        %v722 = vpow.pop %v721
        %v723 = vsel %vm353, %v722, 0.0
        %724 = vadd.xlane.f32.xlu0 %v723
        %v725 = vpop.xlane.xlu0 %724
        %v726 = vpack.c.bf16 %v722, %v722
        %727 = vrot.lane.b32.xlu0 %v338, 48
        %v728 = vpop.permute.xlu0 %727
        %v730 = vsel %vm353, %v726, 0
        %v733 = vsel %vm415, %v728, 0
        %735 = vmatprep.subr.bf16.mxu0 0
        %736 = vmatpush1.bf16.msra.mxu0 %v733
        %737 = vmatprep.subr.bf16.mxu0 0
        %738 = vmatpush1.bf16.msra.mxu0 0
        %739 = vmatprep.subr.bf16.mxu0 0
        %740 = vmatpush1.bf16.msra.mxu0 0
        %741 = vmatprep.subr.bf16.mxu0 0
        %742 = vmatpush1.bf16.msra.mxu0 0
        %743 = vmatprep.subr.bf16.mxu0 0
        %744 = vmatpush1.bf16.msra.mxu0 0
        %745 = vmatprep.subr.bf16.mxu0 0
        %746 = vmatpush1.bf16.msra.mxu0 0
        %747 = vmatprep.subr.bf16.mxu0 0
        %748 = vmatpush1.bf16.msra.mxu0 0
        %749 = vmatprep.subr.bf16.mxu0 0
        %750 = vmatpush1.bf16.msra.mxu0 0
        %751 = vmatprep.subr.bf16.mxu0 0
        %752 = vmatpush1.bf16.msra.mxu0 0
        %753 = vmatprep.subr.bf16.mxu0 0
        %754 = vmatpush1.bf16.msra.mxu0 0
        %755 = vmatprep.subr.bf16.mxu0 0
        %756 = vmatpush1.bf16.msra.mxu0 0
        %757 = vmatprep.subr.bf16.mxu0 0
        %758 = vmatpush1.bf16.msra.mxu0 0
        %759 = vmatprep.subr.bf16.mxu0 0
        %760 = vmatpush1.bf16.msra.mxu0 0
        %761 = vmatprep.subr.bf16.mxu0 0
        %762 = vmatpush1.bf16.msra.mxu0 0
        %763 = vmatprep.subr.bf16.mxu0 0
        %764 = vmatpush1.bf16.msra.mxu0 0
        %765 = vmatprep.subr.bf16.mxu0 0
        %766 = vmatpush1.bf16.msra.mxu0 0
        %767 = vmatprep.mubr.bf16.mxu0 0
        %768 = vmatmul.mubr.bf16.gmra.mrb[0].mxu0 %v730
        %v769 = vpop.f32.mrb[0].mxu0
        %v770 = vadd.f32 0.0, %v769
        %v771 = vpop.f32.mrb[0].mxu0
        %v772 = vpop.f32.mrb[0].mxu0
        %v773 = vpop.f32.mrb[0].mxu0
        %774 = vdwg.mxu0
        %v775 = vrcp.pop %v725
        %v776 = vmul.f32 %v770, %v775
        %v777 = vpack.c.bf16 %v776, %v776
        %v779 = vsel %vm353, %v777, 0
        %v782 = vsel %vm415, %v341, 0
        %784 = vmatprep.subr.bf16.mxu0 0
        %785 = vmatpush1.bf16.msra.mxu0 %v782
        %786 = vmatprep.subr.bf16.mxu0 0
        %787 = vmatpush1.bf16.msra.mxu0 0
        %788 = vmatprep.subr.bf16.mxu0 0
        %789 = vmatpush1.bf16.msra.mxu0 0
        %790 = vmatprep.subr.bf16.mxu0 0
        %791 = vmatpush1.bf16.msra.mxu0 0
        %792 = vmatprep.subr.bf16.mxu0 0
        %793 = vmatpush1.bf16.msra.mxu0 0
        %794 = vmatprep.subr.bf16.mxu0 0
        %795 = vmatpush1.bf16.msra.mxu0 0
        %796 = vmatprep.subr.bf16.mxu0 0
        %797 = vmatpush1.bf16.msra.mxu0 0
        %798 = vmatprep.subr.bf16.mxu0 0
        %799 = vmatpush1.bf16.msra.mxu0 0
        %800 = vmatprep.subr.bf16.mxu0 0
        %801 = vmatpush1.bf16.msra.mxu0 0
        %802 = vmatprep.subr.bf16.mxu0 0
        %803 = vmatpush1.bf16.msra.mxu0 0
        %804 = vmatprep.subr.bf16.mxu0 0
        %805 = vmatpush1.bf16.msra.mxu0 0
        %806 = vmatprep.subr.bf16.mxu0 0
        %807 = vmatpush1.bf16.msra.mxu0 0
        %808 = vmatprep.subr.bf16.mxu0 0
        %809 = vmatpush1.bf16.msra.mxu0 0
        %810 = vmatprep.subr.bf16.mxu0 0
        %811 = vmatpush1.bf16.msra.mxu0 0
        %812 = vmatprep.subr.bf16.mxu0 0
        %813 = vmatpush1.bf16.msra.mxu0 0
        %814 = vmatprep.subr.bf16.mxu0 0
        %815 = vmatpush1.bf16.msra.mxu0 0
        %816 = vmatprep.mubr.bf16.mxu0 0
        %817 = vmatmul.mubr.bf16.gmra.mrb[0].mxu0 %v779
        %v818 = vpop.f32.mrb[0].mxu0
        %v819 = vadd.f32 0.0, %v818
        %v820 = vpop.f32.mrb[0].mxu0
        %v821 = vpop.f32.mrb[0].mxu0
        %v822 = vpop.f32.mrb[0].mxu0
        %823 = vdwg.mxu0
        %v824 = vadd.f32 %v666, %v819
        %825 = vrot.lane.b32.xlu0 %v338, 104
        %v826 = vpop.permute.xlu0 %825
        %827 = vrot.lane.b32.xlu0 %v338, 72
        %v828 = vpop.permute.xlu0 %827
        %v830 = vsel %vm353, %v826, 0
        %v833 = vsel %vm353, %v828, 0
        %835 = vmatprep.subr.bf16.mxu0 0
        %836 = vmatpush1.bf16.xpose.msra.mxu0 %v833
        %837 = vmatprep.subr.bf16.mxu0 0
        %838 = vmatpush1.bf16.xpose.msra.mxu0 0
        %839 = vmatprep.subr.bf16.mxu0 0
        %840 = vmatpush1.bf16.xpose.msra.mxu0 0
        %841 = vmatprep.subr.bf16.mxu0 0
        %842 = vmatpush1.bf16.xpose.msra.mxu0 0
        %843 = vmatprep.subr.bf16.mxu0 0
        %844 = vmatpush1.bf16.xpose.msra.mxu0 0
        %845 = vmatprep.subr.bf16.mxu0 0
        %846 = vmatpush1.bf16.xpose.msra.mxu0 0
        %847 = vmatprep.subr.bf16.mxu0 0
        %848 = vmatpush1.bf16.xpose.msra.mxu0 0
        %849 = vmatprep.subr.bf16.mxu0 0
        %850 = vmatpush1.bf16.xpose.msra.mxu0 0
        %851 = vmatprep.subr.bf16.mxu0 0
        %852 = vmatpush1.bf16.xpose.msra.mxu0 0
        %853 = vmatprep.subr.bf16.mxu0 0
        %854 = vmatpush1.bf16.xpose.msra.mxu0 0
        %855 = vmatprep.subr.bf16.mxu0 0
        %856 = vmatpush1.bf16.xpose.msra.mxu0 0
        %857 = vmatprep.subr.bf16.mxu0 0
        %858 = vmatpush1.bf16.xpose.msra.mxu0 0
        %859 = vmatprep.subr.bf16.mxu0 0
        %860 = vmatpush1.bf16.xpose.msra.mxu0 0
        %861 = vmatprep.subr.bf16.mxu0 0
        %862 = vmatpush1.bf16.xpose.msra.mxu0 0
        %863 = vmatprep.subr.bf16.mxu0 0
        %864 = vmatpush1.bf16.xpose.msra.mxu0 0
        %865 = vmatprep.subr.bf16.mxu0 0
        %866 = vmatpush1.bf16.xpose.msra.mxu0 0
        %867 = vmatprep.mubr.bf16.mxu0 0
        %868 = vmatmul.mubr.bf16.gmra.mrb[0].mxu0 %v830
        %v869 = vpop.f32.mrb[0].mxu0
        %v870 = vadd.f32 0.0, %v869
        %v871 = vpop.f32.mrb[0].mxu0
        %v872 = vpop.f32.mrb[0].mxu0
        %v873 = vpop.f32.mrb[0].mxu0
        %874 = vdwg.mxu0
        %v875 = vsel %vm353, %v870, -inf
        %876 = vmax.xlane.f32.xlu0 %v875
        %v877 = vpop.xlane.xlu0 %876
        %v878 = vsub.f32 %v870, %v877
        %v879 = vmul.f32 %v878, 1.442695
        %v880 = vpow.pop %v879
        %v881 = vsel %vm353, %v880, 0.0
        %882 = vadd.xlane.f32.xlu0 %v881
        %v883 = vpop.xlane.xlu0 %882
        %v884 = vpack.c.bf16 %v880, %v880
        %885 = vrot.lane.b32.xlu0 %v338, 40
        %v886 = vpop.permute.xlu0 %885
        %v888 = vsel %vm353, %v884, 0
        %v891 = vsel %vm415, %v886, 0
        %893 = vmatprep.subr.bf16.mxu0 0
        %894 = vmatpush1.bf16.msra.mxu0 %v891
        %895 = vmatprep.subr.bf16.mxu0 0
        %896 = vmatpush1.bf16.msra.mxu0 0
        %897 = vmatprep.subr.bf16.mxu0 0
        %898 = vmatpush1.bf16.msra.mxu0 0
        %899 = vmatprep.subr.bf16.mxu0 0
        %900 = vmatpush1.bf16.msra.mxu0 0
        %901 = vmatprep.subr.bf16.mxu0 0
        %902 = vmatpush1.bf16.msra.mxu0 0
        %903 = vmatprep.subr.bf16.mxu0 0
        %904 = vmatpush1.bf16.msra.mxu0 0
        %905 = vmatprep.subr.bf16.mxu0 0
        %906 = vmatpush1.bf16.msra.mxu0 0
        %907 = vmatprep.subr.bf16.mxu0 0
        %908 = vmatpush1.bf16.msra.mxu0 0
        %909 = vmatprep.subr.bf16.mxu0 0
        %910 = vmatpush1.bf16.msra.mxu0 0
        %911 = vmatprep.subr.bf16.mxu0 0
        %912 = vmatpush1.bf16.msra.mxu0 0
        %913 = vmatprep.subr.bf16.mxu0 0
        %914 = vmatpush1.bf16.msra.mxu0 0
        %915 = vmatprep.subr.bf16.mxu0 0
        %916 = vmatpush1.bf16.msra.mxu0 0
        %917 = vmatprep.subr.bf16.mxu0 0
        %918 = vmatpush1.bf16.msra.mxu0 0
        %919 = vmatprep.subr.bf16.mxu0 0
        %920 = vmatpush1.bf16.msra.mxu0 0
        %921 = vmatprep.subr.bf16.mxu0 0
        %922 = vmatpush1.bf16.msra.mxu0 0
        %923 = vmatprep.subr.bf16.mxu0 0
        %924 = vmatpush1.bf16.msra.mxu0 0
        %925 = vmatprep.mubr.bf16.mxu0 0
        %926 = vmatmul.mubr.bf16.gmra.mrb[0].mxu0 %v888
        %v927 = vpop.f32.mrb[0].mxu0
        %v928 = vadd.f32 0.0, %v927
        %v929 = vpop.f32.mrb[0].mxu0
        %v930 = vpop.f32.mrb[0].mxu0
        %v931 = vpop.f32.mrb[0].mxu0
        %932 = vdwg.mxu0
        %v933 = vrcp.pop %v883
        %v934 = vmul.f32 %v928, %v933
        %v935 = vpack.c.bf16 %v934, %v934
        %v937 = vsel %vm353, %v935, 0
        %v940 = vsel %vm415, %v342, 0
        %942 = vmatprep.subr.bf16.mxu0 0
        %943 = vmatpush1.bf16.msra.mxu0 %v940
        %944 = vmatprep.subr.bf16.mxu0 0
        %945 = vmatpush1.bf16.msra.mxu0 0
        %946 = vmatprep.subr.bf16.mxu0 0
        %947 = vmatpush1.bf16.msra.mxu0 0
        %948 = vmatprep.subr.bf16.mxu0 0
        %949 = vmatpush1.bf16.msra.mxu0 0
        %950 = vmatprep.subr.bf16.mxu0 0
        %951 = vmatpush1.bf16.msra.mxu0 0
        %952 = vmatprep.subr.bf16.mxu0 0
        %953 = vmatpush1.bf16.msra.mxu0 0
        %954 = vmatprep.subr.bf16.mxu0 0
        %955 = vmatpush1.bf16.msra.mxu0 0
        %956 = vmatprep.subr.bf16.mxu0 0
        %957 = vmatpush1.bf16.msra.mxu0 0
        %958 = vmatprep.subr.bf16.mxu0 0
        %959 = vmatpush1.bf16.msra.mxu0 0
        %960 = vmatprep.subr.bf16.mxu0 0
        %961 = vmatpush1.bf16.msra.mxu0 0
        %962 = vmatprep.subr.bf16.mxu0 0
        %963 = vmatpush1.bf16.msra.mxu0 0
        %964 = vmatprep.subr.bf16.mxu0 0
        %965 = vmatpush1.bf16.msra.mxu0 0
        %966 = vmatprep.subr.bf16.mxu0 0
        %967 = vmatpush1.bf16.msra.mxu0 0
        %968 = vmatprep.subr.bf16.mxu0 0
        %969 = vmatpush1.bf16.msra.mxu0 0
        %970 = vmatprep.subr.bf16.mxu0 0
        %971 = vmatpush1.bf16.msra.mxu0 0
        %972 = vmatprep.subr.bf16.mxu0 0
        %973 = vmatpush1.bf16.msra.mxu0 0
        %974 = vmatprep.mubr.bf16.mxu0 0
        %975 = vmatmul.mubr.bf16.gmra.mrb[0].mxu0 %v937
        %v976 = vpop.f32.mrb[0].mxu0
        %v977 = vadd.f32 0.0, %v976
        %v978 = vpop.f32.mrb[0].mxu0
        %v979 = vpop.f32.mrb[0].mxu0
        %v980 = vpop.f32.mrb[0].mxu0
        %981 = vdwg.mxu0
        %v982 = vadd.f32 %v824, %v977
        %983 = vst.msk [vmem:[%s268] sm:$0xff] %vm294, %v982
        %s984 = sand.u32 %s141, 1
        %s985 = scalar_lea.sflag [#allocation4], %s984
        %s986 = sand.u32 %s141, 1
        %s987 = smul.addr %s986, 8
        %s988 = scalar_lea.vmem [#allocation8], %s987
        // Predicated region
        $region53: #{tpu_custom_call.1} parent=39 // pred_check
          %p989 = pneg %p151
        $region54: #{tpu_custom_call.1} parent=39 // pred_check_branch
          %991 = sbr.rel (%p989) target = $region56
        $region55: #{tpu_custom_call.1} parent=39 // pred_region
          %s993 = ssub.s32 128, 128
          %994 = vsyncadd %s985, %s993
          %s995 = smul.addr %s23, 128
          %s996 = scalar_lea.hbm %s5, %s995
          %s998 = sshll.u32 %s988, 4
          %s999 = int_to_ptr.vmem [resolvable:$true] %s998
          %1001 = dma.vmem_to_hbm [thread:$0]  %s999, 128, %s996, %s985
        $region56: #{tpu_custom_call.1} parent=39 // pred_fallthru
          _
      $region40: #{tpu_custom_call.1} parent=5 // pred_fallthru
        _
      %p1002 = scmp.le.s32.totalorder 2, %s18
      // Predicated region
      $region57: #{tpu_custom_call.1} parent=5 // pred_check
        %p1003 = pneg %p1002
      $region58: #{tpu_custom_call.1} parent=5 // pred_check_branch
        %1005 = sbr.rel (%p1003) target = $region60
      $region59: #{tpu_custom_call.1} parent=5 // pred_region
        %s1006 = ssub.s32 %s18, 2
        // Predicated region
        $region61: #{tpu_custom_call.1} parent=59 // pred_check
          %p1007 = pneg %p157
        $region62: #{tpu_custom_call.1} parent=59 // pred_check_branch
          %1009 = sbr.rel (%p1007) target = $region64
        $region63: #{tpu_custom_call.1} parent=59 // pred_region
          %s1010 = sand.u32 %s142, 1
          %s1011 = scalar_lea.sflag [#allocation4], %s1010
          %s1012 = sand.u32 %s142, 1
          %s1013 = smul.addr %s1012, 8
          %s1014 = scalar_lea.vmem [#allocation8], %s1013
          %1015 = dma.done %s1011, 128
        $region64: #{tpu_custom_call.1} parent=59 // pred_fallthru
          _
      $region60: #{tpu_custom_call.1} parent=5 // pred_fallthru
        _
    $region6: #{tpu_custom_call.1} parent=1 // loop_footer
      %s22 = sadd.s32 1, %s18
    $region7: #{tpu_custom_call.1} parent=1 // loop_footer_branch
      %17 = sbr.rel target = $region3
    $region8: #{tpu_custom_call.1} parent=1 // loop_exit
      _
    %1016 = vsyncpa [#allocation3], 1
    %s1017 = scalar_lea.sflag [#allocation3], 1
    %1018 = vsyncpa %s1017, 1
    %1019 = vsyncpa [#allocation6], 1
    %1020 = vsyncpa [#allocation4], 1
    %s1021 = scalar_lea.sflag [#allocation4], 1
    %1022 = vsyncpa %s1021, 1

</llo_original>
